<compile_context>
chip_gen: v5e
topology: v5e:2x2
jax: 0.10.0
libtpu: 0.0.40
codegen_flags: <defaults>
</compile_context>

<pallas_src>
import jax
import jax.numpy as jnp
from jax.experimental import pallas as pl
from jax.experimental.pallas import tpu as pltpu


# ----------------------------- kernel body ---------------------------------


def _fusion_kernel(audio_ref, img_ref, text_ref, w_ref, out_ref):
    # audio_ref: (TB, TA, 1, 1)  audio scalars (broadcast over the (I,T) plane)
    # img_ref:   (TB, I, 1)      image column vectors
    # text_ref:  (TB, 1, T)      text row vectors
    # w_ref:     (TA, I, T)      learnable W tile (block index constant over B)
    # out_ref:   (TB, TA, I, T)
    it = img_ref[...] * text_ref[...]                      # (TB, I, T) rank-1 outer product (VPU)
    # Single elementwise expression so Mosaic keeps one pass per output vreg
    # (no VMEM temporary for it*W): 1 vld of W, 2 vmul, 1 vst.
    out_ref[...] = audio_ref[...] * (it[:, None, :, :] * w_ref[...][None, :, :, :])


# ----------------------------- helpers --------------------------------------


def _cdiv(a, b):
    return -(-a // b)


def _ceil_to(n, m):
    return _cdiv(n, m) * m


def _largest_divisor_at_most(n, cap):
    cap = max(1, min(n, cap))
    for d in range(cap, 0, -1):
        if n % d == 0:
            return d
    return 1


def _physical_vmem_bytes():
    # Per-generation physical VMEM per TensorCore (v5e/v6e: 128 MiB, v7x: 64 MiB).
    try:
        return int(pltpu.get_tpu_info().vmem_capacity_bytes)
    except Exception:
        return 64 * 1024 * 1024  # assume the most constrained generation


def _padded_block_bytes(last_two):
    # f32 VMEM bytes of one (sublane, lane) plane padded to (8, 128) vreg tiles.
    s, l = last_two
    return _ceil_to(s, 8) * _ceil_to(l, 128) * 4


# ----------------------------- wrapper ---------------------------------------


def tensor_fusion(img_emb, text_emb, audio_emb, weight, *, tile_a=None, tile_b=None):
    """TFN forward.

    img_emb:   (B, I) f32
    text_emb:  (B, T) f32
    audio_emb: (B, A) f32
    weight:    (A, I, T) f32   (LearnableVec W, broadcast over batch)
    returns:   (B, A*I*T) f32
    """
    B, I = img_emb.shape
    _, T = text_emb.shape
    _, A = audio_emb.shape
    assert weight.shape == (A, I, T)

    # ---- per-generation VMEM budget (leave ~20% headroom for compiler scratch)
    budget = int(_physical_vmem_bytes() * 0.8)
    slab = _padded_block_bytes((I, T))                     # one padded (I, T) f32 plane

    # ---- A tile: prefer full-A W residency (exactly one HBM read of W);
    # ---- keep the single-buffered W tile under ~40% of the budget.
    if tile_a is None:
        ta = _largest_divisor_at_most(A, max(1, (budget * 2 // 5) // slab))
    else:
        ta = tile_a
    assert A % ta == 0, "tile_a must divide audio_len"
    num_a_tiles = A // ta

    # ---- B tile: target MiB-class (double-buffered) output blocks to amortize
    # ---- per-step overhead; on v7x keep >=2 B steps when A has a single tile
    # ---- so megacore sharding has something to split.
    if tile_b is None:
        per_b = ta * slab
        tb_cap = max(1, min((budget * 9 // 20) // (2 * per_b),
                            _cdiv(2 * 1024 * 1024, per_b)))
        if num_a_tiles == 1 and B >= 2:
            tb_cap = min(tb_cap, B // 2)
        tb = _largest_divisor_at_most(B, tb_cap)
    else:
        tb = tile_b
    assert B % tb == 0, "tile_b must divide batch_size"
    num_b_tiles = B // tb

    # Wrapper glue reshapes: tiled dims stay leading, last two block dims always
    # equal the full array dims (layout-safe for any ta/tb/I/T).
    audio4 = audio_emb[:, :, None, None]    # (B, A, 1, 1)
    img3 = img_emb[:, :, None]              # (B, I, 1)
    text3 = text_emb[:, None, :]            # (B, 1, T)

    # Scoped-VMEM request: actual (padded, buffered) block footprint + headroom.
    footprint = (2 * tb * ta * slab                               # out block, double-buffered
                 + 1 * ta * slab                                  # W block, single-buffered
                 + 2 * (tb * ta * _padded_block_bytes((1, 1))     # audio (padded scalars)
                        + tb * _padded_block_bytes((I, 1))        # img
                        + tb * _padded_block_bytes((1, T))))      # text
    vmem_limit = min(budget, max(footprint + (4 << 20), 16 << 20))

    itemsize = 4
    cost = pl.CostEstimate(
        flops=2 * B * A * I * T + num_a_tiles * B * I * T,
        transcendentals=0,
        bytes_accessed=itemsize * (B * A * I * T          # output writeback (dominant)
                                   + A * I * T            # W: one HBM read per A-tile value
                                   + B * A                # audio
                                   + num_a_tiles * B * (I + T)),
    )

    def build(single_buffer_w):
        w_kwargs = {}
        if single_buffer_w:
            # W's block index is constant across the inner B sweep; a single
            # buffer halves its VMEM (frees room for bigger tb/ta on v7x).
            w_kwargs["pipeline_mode"] = pl.Buffered(1)
        return pl.pallas_call(
            _fusion_kernel,
            out_shape=jax.ShapeDtypeStruct((B, A, I, T), jnp.float32),
            # A-tile OUTER, B inner: W's HBM->VMEM copy happens only when the
            # A-tile changes (once total when num_a_tiles == 1).
            grid=(num_a_tiles, num_b_tiles),
            in_specs=[
                pl.BlockSpec((tb, ta, 1, 1), lambda at, b: (b, at, 0, 0)),
                pl.BlockSpec((tb, I, 1), lambda at, b: (b, 0, 0)),
                pl.BlockSpec((tb, 1, T), lambda at, b: (b, 0, 0)),
                pl.BlockSpec((ta, I, T), lambda at, b: (at, 0, 0), **w_kwargs),
            ],
            out_specs=pl.BlockSpec((tb, ta, I, T), lambda at, b: (b, at, 0, 0)),
            compiler_params=pltpu.CompilerParams(
                dimension_semantics=("parallel", "parallel"),
                vmem_limit_bytes=vmem_limit,
            ),
            cost_estimate=cost,
        )

    try:
        out = build(True)(audio4, img3, text3, weight)
    except Exception:
        # Fallback for jax versions without BlockSpec(pipeline_mode=pl.Buffered(1)).
        out = build(False)(audio4, img3, text3, weight)

    # Row-major flatten == torch .view(batch_size, -1) of the bmm-chain output.
    return out.reshape(B, A * I * T)


# ----------------------------- demo / self-test ------------------------------


if __name__ == "__main__":
    key = jax.random.PRNGKey(0)
    k1, k2, k3, k4 = jax.random.split(key, 4)

    # Small shapes consistent with the module's (batch, feature) inputs.
    B, A, I, T = 2, 4, 8, 128
    img_emb = jax.random.normal(k1, (B, I), dtype=jnp.float32)
    text_emb = jax.random.normal(k2, (B, T), dtype=jnp.float32)
    audio_emb = jax.random.normal(k3, (B, A), dtype=jnp.float32)
    # Deterministic stand-in for torch.randn(tensor_dim) with tensor_dim=(A, I, T).
    weight = jax.random.normal(k4, (A, I, T), dtype=jnp.float32)

    # Pure-JAX reference of the PyTorch forward (bmm outer products + W scaling).
    ref = jnp.einsum("ba,bi,bt->bait", audio_emb, img_emb, text_emb) * weight[None]
    ref = ref.reshape(B, -1)

    # Default path: full-A W residency, auto batch tile (>=2 grid steps for v7x).
    out = jax.block_until_ready(tensor_fusion(img_emb, text_emb, audio_emb, weight))
    assert out.shape == (B, A * I * T)
    assert jnp.allclose(out, ref, atol=1e-5, rtol=1e-5)

    # A-tiled path (the W-doesn't-fit-VMEM case) — also exercises TB > 1.
    out_tiled = jax.block_until_ready(
        tensor_fusion(img_emb, text_emb, audio_emb, weight, tile_a=2))
    assert jnp.allclose(out_tiled, ref, atol=1e-5, rtol=1e-5)

    print("KERNEL_OK")
</pallas_src>

<mosaic_0001>
module attributes {stable_mosaic.version = 11 : i64} {
  func.func @_fusion_kernel(%arg0: i32, %arg1: i32, %arg2: memref<1x4x1x1xf32, #tpu.memory_space<vmem>>, %arg3: memref<1x8x1xf32, #tpu.memory_space<vmem>>, %arg4: memref<1x1x128xf32, #tpu.memory_space<vmem>>, %arg5: memref<4x8x128xf32, #tpu.memory_space<vmem>>, %arg6: memref<1x4x8x128xf32, #tpu.memory_space<vmem>>) attributes {dimension_semantics = [#tpu.dimension_semantics<parallel>, #tpu.dimension_semantics<parallel>], iteration_bounds = array<i64: 1, 2>, scalar_prefetch = 0 : i64, scratch_operands = 0 : i64, tpu.core_type = #tpu.core_type<tc>, window_params = [{transform_indices = @transform_0, window_bounds = array<i64: 1, 4, 1, 1>}, {transform_indices = @transform_1, window_bounds = array<i64: 1, 8, 1>}, {transform_indices = @transform_2, window_bounds = array<i64: 1, 1, 128>}, {pipeline_mode = #tpu.pipeline_mode<synchronous>, transform_indices = @transform_3, window_bounds = array<i64: 4, 8, 128>}, {transform_indices = @transform_4, window_bounds = array<i64: 1, 4, 8, 128>}]} {
    %c0 = arith.constant 0 : index
    %c0_0 = arith.constant 0 : index
    %c0_1 = arith.constant 0 : index
    %0 = vector.load %arg3[%c0, %c0_0, %c0_1] : memref<1x8x1xf32, #tpu.memory_space<vmem>>, vector<1x8x1xf32>
    %c0_2 = arith.constant 0 : index
    %c0_3 = arith.constant 0 : index
    %c0_4 = arith.constant 0 : index
    %1 = vector.load %arg4[%c0_2, %c0_3, %c0_4] : memref<1x1x128xf32, #tpu.memory_space<vmem>>, vector<1x1x128xf32>
    %2 = vector.broadcast %0 : vector<1x8x1xf32> to vector<1x8x128xf32>
    %3 = vector.broadcast %1 : vector<1x1x128xf32> to vector<1x8x128xf32>
    %4 = arith.mulf %2, %3 : vector<1x8x128xf32>
    %c0_5 = arith.constant 0 : index
    %c0_6 = arith.constant 0 : index
    %c0_7 = arith.constant 0 : index
    %c0_8 = arith.constant 0 : index
    %5 = vector.load %arg2[%c0_5, %c0_6, %c0_7, %c0_8] : memref<1x4x1x1xf32, #tpu.memory_space<vmem>>, vector<1x4x1x1xf32>
    %6 = vector.shape_cast %4 : vector<1x8x128xf32> to vector<1x1x8x128xf32>
    %c0_9 = arith.constant 0 : index
    %c0_10 = arith.constant 0 : index
    %c0_11 = arith.constant 0 : index
    %7 = vector.load %arg5[%c0_9, %c0_10, %c0_11] : memref<4x8x128xf32, #tpu.memory_space<vmem>>, vector<4x8x128xf32>
    %8 = vector.shape_cast %7 : vector<4x8x128xf32> to vector<1x4x8x128xf32>
    %9 = vector.broadcast %6 : vector<1x1x8x128xf32> to vector<1x4x8x128xf32>
    %10 = arith.mulf %9, %8 : vector<1x4x8x128xf32>
    %11 = vector.broadcast %5 : vector<1x4x1x1xf32> to vector<1x4x8x128xf32>
    %12 = arith.mulf %11, %10 : vector<1x4x8x128xf32>
    %c0_12 = arith.constant 0 : index
    %c0_13 = arith.constant 0 : index
    %c0_14 = arith.constant 0 : index
    %c0_15 = arith.constant 0 : index
    %13 = vector.load %arg6[%c0_12, %c0_13, %c0_14, %c0_15] : memref<1x4x8x128xf32, #tpu.memory_space<vmem>>, vector<1x4x8x128xf32>
    tpu.vector_store %arg6[%c0_12, %c0_13, %c0_14, %c0_15], %12 {strides = array<i32>} : memref<1x4x8x128xf32, #tpu.memory_space<vmem>>, vector<1x4x8x128xf32>,
    return
  }
  func.func @transform_0(%arg0: i32, %arg1: i32) -> (i32, i32, i32, i32) {
    %c0_i32 = arith.constant 0 : i32
    %c0_i32_0 = arith.constant 0 : i32
    %c0_i32_1 = arith.constant 0 : i32
    return %arg1, %arg0, %c0_i32, %c0_i32_0 : i32, i32, i32, i32
  }
  func.func @transform_1(%arg0: i32, %arg1: i32) -> (i32, i32, i32) {
    %c0_i32 = arith.constant 0 : i32
    %c0_i32_0 = arith.constant 0 : i32
    %c0_i32_1 = arith.constant 0 : i32
    return %arg1, %c0_i32, %c0_i32_0 : i32, i32, i32
  }
  func.func @transform_2(%arg0: i32, %arg1: i32) -> (i32, i32, i32) {
    %c0_i32 = arith.constant 0 : i32
    %c0_i32_0 = arith.constant 0 : i32
    %c0_i32_1 = arith.constant 0 : i32
    return %arg1, %c0_i32, %c0_i32_0 : i32, i32, i32
  }
  func.func @transform_3(%arg0: i32, %arg1: i32) -> (i32, i32, i32) {
    %c0_i32 = arith.constant 0 : i32
    %c0_i32_0 = arith.constant 0 : i32
    %c0_i32_1 = arith.constant 0 : i32
    return %arg0, %c0_i32, %c0_i32_0 : i32, i32, i32
  }
  func.func @transform_4(%arg0: i32, %arg1: i32) -> (i32, i32, i32, i32) {
    %c0_i32 = arith.constant 0 : i32
    %c0_i32_0 = arith.constant 0 : i32
    %c0_i32_1 = arith.constant 0 : i32
    return %arg1, %arg0, %c0_i32, %c0_i32_0 : i32, i32, i32, i32
  }
}

module attributes {stable_mosaic.version = 11 : i64} {
  func.func @_fusion_kernel(%arg0: i32, %arg1: i32, %arg2: memref<1x4x1x1xf32, #tpu.memory_space<vmem>>, %arg3: memref<1x8x1xf32, #tpu.memory_space<vmem>>, %arg4: memref<1x1x128xf32, #tpu.memory_space<vmem>>, %arg5: memref<4x8x128xf32, #tpu.memory_space<vmem>>, %arg6: memref<1x4x8x128xf32, #tpu.memory_space<vmem>>) attributes {dimension_semantics = [#tpu.dimension_semantics<parallel>, #tpu.dimension_semantics<parallel>], iteration_bounds = array<i64: 1, 2>, scalar_prefetch = 0 : i64, scratch_operands = 0 : i64, tpu.core_type = #tpu.core_type<tc>, window_params = [{transform_indices = @transform_0, window_bounds = array<i64: 1, 4, 1, 1>}, {transform_indices = @transform_1, window_bounds = array<i64: 1, 8, 1>}, {transform_indices = @transform_2, window_bounds = array<i64: 1, 1, 128>}, {transform_indices = @transform_3, window_bounds = array<i64: 4, 8, 128>}, {transform_indices = @transform_4, window_bounds = array<i64: 1, 4, 8, 128>}]} {
    %c0 = arith.constant 0 : index
    %c0_0 = arith.constant 0 : index
    %c0_1 = arith.constant 0 : index
    %0 = vector.load %arg3[%c0, %c0_0, %c0_1] : memref<1x8x1xf32, #tpu.memory_space<vmem>>, vector<1x8x1xf32>
    %c0_2 = arith.constant 0 : index
    %c0_3 = arith.constant 0 : index
    %c0_4 = arith.constant 0 : index
    %1 = vector.load %arg4[%c0_2, %c0_3, %c0_4] : memref<1x1x128xf32, #tpu.memory_space<vmem>>, vector<1x1x128xf32>
    %2 = vector.broadcast %0 : vector<1x8x1xf32> to vector<1x8x128xf32>
    %3 = vector.broadcast %1 : vector<1x1x128xf32> to vector<1x8x128xf32>
    %4 = arith.mulf %2, %3 : vector<1x8x128xf32>
    %c0_5 = arith.constant 0 : index
    %c0_6 = arith.constant 0 : index
    %c0_7 = arith.constant 0 : index
    %c0_8 = arith.constant 0 : index
    %5 = vector.load %arg2[%c0_5, %c0_6, %c0_7, %c0_8] : memref<1x4x1x1xf32, #tpu.memory_space<vmem>>, vector<1x4x1x1xf32>
    %6 = vector.shape_cast %4 : vector<1x8x128xf32> to vector<1x1x8x128xf32>
    %c0_9 = arith.constant 0 : index
    %c0_10 = arith.constant 0 : index
    %c0_11 = arith.constant 0 : index
    %7 = vector.load %arg5[%c0_9, %c0_10, %c0_11] : memref<4x8x128xf32, #tpu.memory_space<vmem>>, vector<4x8x128xf32>
    %8 = vector.shape_cast %7 : vector<4x8x128xf32> to vector<1x4x8x128xf32>
    %9 = vector.broadcast %6 : vector<1x1x8x128xf32> to vector<1x4x8x128xf32>
    %10 = arith.mulf %9, %8 : vector<1x4x8x128xf32>
    %11 = vector.broadcast %5 : vector<1x4x1x1xf32> to vector<1x4x8x128xf32>
    %12 = arith.mulf %11, %10 : vector<1x4x8x128xf32>
    %c0_12 = arith.constant 0 : index
    %c0_13 = arith.constant 0 : index
    %c0_14 = arith.constant 0 : index
    %c0_15 = arith.constant 0 : index
    %13 = vector.load %arg6[%c0_12, %c0_13, %c0_14, %c0_15] : memref<1x4x8x128xf32, #tpu.memory_space<vmem>>, vector<1x4x8x128xf32>
    tpu.vector_store %arg6[%c0_12, %c0_13, %c0_14, %c0_15], %12 {strides = array<i32>} : memref<1x4x8x128xf32, #tpu.memory_space<vmem>>, vector<1x4x8x128xf32>,
    return
  }
  func.func @transform_0(%arg0: i32, %arg1: i32) -> (i32, i32, i32, i32) {
    %c0_i32 = arith.constant 0 : i32
    %c0_i32_0 = arith.constant 0 : i32
    %c0_i32_1 = arith.constant 0 : i32
    return %arg1, %arg0, %c0_i32, %c0_i32_0 : i32, i32, i32, i32
  }
  func.func @transform_1(%arg0: i32, %arg1: i32) -> (i32, i32, i32) {
    %c0_i32 = arith.constant 0 : i32
    %c0_i32_0 = arith.constant 0 : i32
    %c0_i32_1 = arith.constant 0 : i32
    return %arg1, %c0_i32, %c0_i32_0 : i32, i32, i32
  }
  func.func @transform_2(%arg0: i32, %arg1: i32) -> (i32, i32, i32) {
    %c0_i32 = arith.constant 0 : i32
    %c0_i32_0 = arith.constant 0 : i32
    %c0_i32_1 = arith.constant 0 : i32
    return %arg1, %c0_i32, %c0_i32_0 : i32, i32, i32
  }
  func.func @transform_3(%arg0: i32, %arg1: i32) -> (i32, i32, i32) {
    %c0_i32 = arith.constant 0 : i32
    %c0_i32_0 = arith.constant 0 : i32
    %c0_i32_1 = arith.constant 0 : i32
    return %arg0, %c0_i32, %c0_i32_0 : i32, i32, i32
  }
  func.func @transform_4(%arg0: i32, %arg1: i32) -> (i32, i32, i32, i32) {
    %c0_i32 = arith.constant 0 : i32
    %c0_i32_0 = arith.constant 0 : i32
    %c0_i32_1 = arith.constant 0 : i32
    return %arg1, %arg0, %c0_i32, %c0_i32_0 : i32, i32, i32, i32
  }
}

</mosaic_0001>

<llo_original>
// kernel: tpu_custom_call.1
$region0: #{tpu_custom_call.1}
  #allocation0 [shape = 'u32[]', space=smem, size = 0x4, offset = 0x4, fixed_abs, tag = 'smem constant byte address 0x4 - core index']
  #allocation1 [shape = 'u32[72,128]{1,0:T(1,128)}', space=vmem, size = 0x9000, scoped, tag = 'internal scratch']
  %s0 = inlined_call_operand.vmem [shape: f32[2,4,1,1], index: 0, kind: input, shape index: {}]
  %s1 = inlined_call_operand.vmem [shape: f32[2,8,1], index: 1, kind: input, shape index: {}]
  %s2 = inlined_call_operand.vmem [shape: f32[2,1,128], index: 2, kind: input, shape index: {}]
  %s3 = inlined_call_operand.hbm [shape: f32[4,8,128], index: 3, kind: input, shape index: {}]
  %s4 = inlined_call_operand.hbm [shape: f32[2,4,8,128], index: 4, kind: output, shape index: {}]
  %s5 = sld [smem:[#allocation0]]
  $region53: #{tpu_custom_call.1} parent=0
    _
  %s7 = ssub.s32 1, %s5
  %s8 = scalar_select 0, %s7, %s5
  $region1: #{tpu_custom_call.1} parent=0
    #allocation2 [shape = 'u8[16384]{0}', space=vmem, size = 0x4000, scoped, tag = 'input window, operand 3, single buffered']
    #allocation3 [shape = 's32[2]{0}', space=sflag, size = 0x8, scoped, tag = 'scoped memory for tpu_custom_call.1']
    #allocation4 [shape = 's32[2]{0}', space=sflag, size = 0x8, scoped, tag = 'scoped memory for tpu_custom_call.1']
    #allocation5 [shape = 'u8[32768]{0}', space=vmem, size = 0x8000, scoped, tag = 'output window, operand 0']
    %9 = vsyncpa [#allocation3], 0
    %10 = vsyncpa [#allocation4], 0
    %s11 = scalar_lea.sflag [#allocation4], 1
    %12 = vsyncpa %s11, 0
    loop: start=0, step=1, limit=4
    $region2: #{tpu_custom_call.1} parent=1 // loop_pre_header
      _
    $region3: #{tpu_custom_call.1} parent=1 // loop_header
      %s14 = sphi 0, %s18
      %p15 = scmp.ge.s32.totalorder %s14, 4
      %s21 = sphi 0, %s33
      %s22 = sphi 0, %s29
      %s23 = sphi 0, %s21
      %s24 = sphi 0, %s22
      %s25 = sphi 0, %s23
      %s26 = sphi 0, %s24
      %s38 = sphi 0, %s40
      %s41 = sphi 0, %s38
      %s42 = sphi 0, %s41
      %s58 = sphi 0, %s42
      %s64 = sphi 0, %s66
      %s67 = sphi 0, %s64
      %s68 = sphi 0, %s67
      %s84 = sphi 0, %s68
      %s90 = sphi 0, %s92
      %s93 = sphi 0, %s90
      %s94 = sphi 0, %s93
      %s110 = sphi 0, %s94
      %s116 = sphi 0, %s118
      %s119 = sphi 0, %s116
      %s120 = sphi 0, %s119
      %s136 = sphi 0, %s120
      %s144 = sphi 0, %s146
      %s147 = sphi 0, %s144
      %s148 = sphi 0, %s147
      %s164 = sphi 0, %s148
    $region4: #{tpu_custom_call.1} parent=1 // loop_header_branch
      %17 = sbr.rel (%p15) target = $region8
    $region5: #{tpu_custom_call.1} parent=1 // loop_body
      %s19 = ssub.s32 %s14, 1
      %s20 = ssub.s32 %s14, 2
      %s27 = sadd.s32 1, %s22
      %p28 = scmp.ge.s32.totalorder %s27, 2
      %s29 = scalar_select %p28, 0, %s27
      %s30 = sadd.s32 1, %s21
      %s31 = scalar_select %p28, %s30, %s21
      %p32 = scmp.ge.s32.totalorder %s31, 1
      %s33 = scalar_select %p32, 0, %s31
      %s34 = ssub.s32 %s22, %s29
      %s35 = ssub.s32 %s21, %s33
      %s36 = sor.u32 %s34, %s35
      %p37 = scmp.eq.s32.totalorder %s36, 0
      %s39 = sadd.s32 %s38, 1
      %s40 = scalar_select %p37, %s38, %s39
      %p43 = pneg %p37
      %p44 = scmp.eq.s32.totalorder %s14, 1
      %p45 = por %p43, %p44
      %p46 = scmp.ne.s32.totalorder %s38, %s41
      %p47 = scmp.eq.s32.totalorder %s14, 0
      %p48 = por %p46, %p47
      %p49 = scmp.ne.s32.totalorder %s38, %s41
      %p50 = scmp.eq.s32.totalorder %s19, 1
      %p51 = por %p49, %p50
      %p52 = scmp.ne.s32.totalorder %s41, %s42
      %p53 = scmp.eq.s32.totalorder %s19, 0
      %p54 = por %p52, %p53
      %p55 = scmp.ne.s32.totalorder %s41, %s42
      %p56 = scmp.eq.s32.totalorder %s20, 1
      %p57 = por %p55, %p56
      %p59 = scmp.ne.s32.totalorder %s42, %s58
      %p60 = scmp.eq.s32.totalorder %s20, 0
      %p61 = por %p59, %p60
      %s62 = ssub.s32 %s22, %s29
      %p63 = scmp.eq.s32.totalorder %s62, 0
      %s65 = sadd.s32 %s64, 1
      %s66 = scalar_select %p63, %s64, %s65
      %p69 = pneg %p63
      %p70 = scmp.eq.s32.totalorder %s14, 1
      %p71 = por %p69, %p70
      %p72 = scmp.ne.s32.totalorder %s64, %s67
      %p73 = scmp.eq.s32.totalorder %s14, 0
      %p74 = por %p72, %p73
      %p75 = scmp.ne.s32.totalorder %s64, %s67
      %p76 = scmp.eq.s32.totalorder %s19, 1
      %p77 = por %p75, %p76
      %p78 = scmp.ne.s32.totalorder %s67, %s68
      %p79 = scmp.eq.s32.totalorder %s19, 0
      %p80 = por %p78, %p79
      %p81 = scmp.ne.s32.totalorder %s67, %s68
      %p82 = scmp.eq.s32.totalorder %s20, 1
      %p83 = por %p81, %p82
      %p85 = scmp.ne.s32.totalorder %s68, %s84
      %p86 = scmp.eq.s32.totalorder %s20, 0
      %p87 = por %p85, %p86
      %s88 = ssub.s32 %s22, %s29
      %p89 = scmp.eq.s32.totalorder %s88, 0
      %s91 = sadd.s32 %s90, 1
      %s92 = scalar_select %p89, %s90, %s91
      %p95 = pneg %p89
      %p96 = scmp.eq.s32.totalorder %s14, 1
      %p97 = por %p95, %p96
      %p98 = scmp.ne.s32.totalorder %s90, %s93
      %p99 = scmp.eq.s32.totalorder %s14, 0
      %p100 = por %p98, %p99
      %p101 = scmp.ne.s32.totalorder %s90, %s93
      %p102 = scmp.eq.s32.totalorder %s19, 1
      %p103 = por %p101, %p102
      %p104 = scmp.ne.s32.totalorder %s93, %s94
      %p105 = scmp.eq.s32.totalorder %s19, 0
      %p106 = por %p104, %p105
      %p107 = scmp.ne.s32.totalorder %s93, %s94
      %p108 = scmp.eq.s32.totalorder %s20, 1
      %p109 = por %p107, %p108
      %p111 = scmp.ne.s32.totalorder %s94, %s110
      %p112 = scmp.eq.s32.totalorder %s20, 0
      %p113 = por %p111, %p112
      %s114 = ssub.s32 %s21, %s33
      %p115 = scmp.eq.s32.totalorder %s114, 0
      %s117 = sadd.s32 %s116, 1
      %s118 = scalar_select %p115, %s116, %s117
      %p121 = pneg %p115
      %p122 = scmp.eq.s32.totalorder %s14, 1
      %p123 = por %p121, %p122
      %p124 = scmp.ne.s32.totalorder %s116, %s119
      %p125 = scmp.eq.s32.totalorder %s14, 0
      %p126 = por %p124, %p125
      %p127 = scmp.ne.s32.totalorder %s116, %s119
      %p128 = scmp.eq.s32.totalorder %s19, 1
      %p129 = por %p127, %p128
      %p130 = scmp.ne.s32.totalorder %s119, %s120
      %p131 = scmp.eq.s32.totalorder %s19, 0
      %p132 = por %p130, %p131
      %p133 = scmp.ne.s32.totalorder %s119, %s120
      %p134 = scmp.eq.s32.totalorder %s20, 1
      %p135 = por %p133, %p134
      %p137 = scmp.ne.s32.totalorder %s120, %s136
      %p138 = scmp.eq.s32.totalorder %s20, 0
      %p139 = por %p137, %p138
      %s140 = ssub.s32 %s22, %s29
      %s141 = ssub.s32 %s21, %s33
      %s142 = sor.u32 %s140, %s141
      %p143 = scmp.eq.s32.totalorder %s142, 0
      %s145 = sadd.s32 %s144, 1
      %s146 = scalar_select %p143, %s144, %s145
      %p149 = pneg %p143
      %p150 = scmp.eq.s32.totalorder %s14, 1
      %p151 = por %p149, %p150
      %p152 = scmp.ne.s32.totalorder %s144, %s147
      %p153 = scmp.eq.s32.totalorder %s14, 0
      %p154 = por %p152, %p153
      %p155 = scmp.ne.s32.totalorder %s144, %s147
      %p156 = scmp.eq.s32.totalorder %s19, 1
      %p157 = por %p155, %p156
      %p158 = scmp.ne.s32.totalorder %s147, %s148
      %p159 = scmp.eq.s32.totalorder %s19, 0
      %p160 = por %p158, %p159
      %p161 = scmp.ne.s32.totalorder %s147, %s148
      %p162 = scmp.eq.s32.totalorder %s20, 1
      %p163 = por %p161, %p162
      %p165 = scmp.ne.s32.totalorder %s148, %s164
      %p166 = scmp.eq.s32.totalorder %s20, 0
      %p167 = por %p165, %p166
      %p168 = scmp.le.s32.totalorder 1, %s14
      %p169 = scmp.lt.s32.totalorder %s14, 3
      %p170 = pnand %p168, %p169
      %p171 = pneg %p170
      // Predicated region
      $region9: #{tpu_custom_call.1} parent=5 // pred_check
        _
      $region10: #{tpu_custom_call.1} parent=5 // pred_check_branch
        %173 = sbr.rel (%p170) target = $region12
      $region11: #{tpu_custom_call.1} parent=5 // pred_region
        %s174 = ssub.s32 %s14, 1
        // Predicated region
        $region13: #{tpu_custom_call.1} parent=11 // pred_check
          %p175 = pneg %p132
        $region14: #{tpu_custom_call.1} parent=11 // pred_check_branch
          %177 = sbr.rel (%p175) target = $region16
        $region15: #{tpu_custom_call.1} parent=11 // pred_region
          %s178 = smul.u32 4, %s23
          %180 = vsyncadd [#allocation3], 0
          %s181 = smul.addr %s178, 8
          %s182 = scalar_lea.hbm %s3, %s181
          %s183 = sshll.u32 %s182, 4
          %s184 = int_to_ptr.hbm [resolvable:$true] %s183
          %s185 = sshll.u32 [#allocation2], 4
          %s186 = int_to_ptr.vmem [resolvable:$true] %s185
          %191 = dma.hbm_to_vmem [thread:$0]  %s184, 512, %s186, [#allocation3], 128, 128, 8
        $region16: #{tpu_custom_call.1} parent=11 // pred_fallthru
          _
      $region12: #{tpu_custom_call.1} parent=5 // pred_fallthru
        _
      %p192 = scmp.lt.s32.totalorder %s14, 2
      // Predicated region
      $region17: #{tpu_custom_call.1} parent=5 // pred_check
        %p193 = pneg %p192
      $region18: #{tpu_custom_call.1} parent=5 // pred_check_branch
        %195 = sbr.rel (%p193) target = $region20
      $region19: #{tpu_custom_call.1} parent=5 // pred_region
        // Predicated region
        $region21: #{tpu_custom_call.1} parent=19 // pred_check
          %p196 = pneg %p48
        $region22: #{tpu_custom_call.1} parent=19 // pred_check_branch
          %198 = sbr.rel (%p196) target = $region24
        $region23: #{tpu_custom_call.1} parent=19 // pred_region
          %s199 = smul.u32 4, %s21
          %p200 = scmp.lt.s32.totalorder %s22, 1
          %s201 = scalar_select %p200, %s22, 1
          %p202 = scmp.lt.s32.totalorder %s199, 3
          %s203 = scalar_select %p202, %s199, 3
          %s204 = smul.addr %s201, 4
          %s205 = sadd.s32 %s203, %s204
          %s206 = scalar_lea.vmem %s0, %s205
          %s207 = smul.u32 4, %s21
        $region24: #{tpu_custom_call.1} parent=19 // pred_fallthru
          _
        // Predicated region
        $region25: #{tpu_custom_call.1} parent=19 // pred_check
          %p208 = pneg %p74
        $region26: #{tpu_custom_call.1} parent=19 // pred_check_branch
          %210 = sbr.rel (%p208) target = $region28
        $region27: #{tpu_custom_call.1} parent=19 // pred_region
          %p211 = scmp.lt.s32.totalorder %s22, 1
          %s212 = scalar_select %p211, %s22, 1
          %s213 = smul.addr %s212, 8
          %s214 = scalar_lea.vmem %s1, %s213
        $region28: #{tpu_custom_call.1} parent=19 // pred_fallthru
          _
        // Predicated region
        $region29: #{tpu_custom_call.1} parent=19 // pred_check
          %p215 = pneg %p100
        $region30: #{tpu_custom_call.1} parent=19 // pred_check_branch
          %217 = sbr.rel (%p215) target = $region32
        $region31: #{tpu_custom_call.1} parent=19 // pred_region
          %p218 = scmp.lt.s32.totalorder %s22, 1
          %s219 = scalar_select %p218, %s22, 1
          %s220 = scalar_lea.vmem %s2, %s219
        $region32: #{tpu_custom_call.1} parent=19 // pred_fallthru
          _
      $region20: #{tpu_custom_call.1} parent=5 // pred_fallthru
        _
      %p221 = scmp.le.s32.totalorder 1, %s14
      %p222 = scmp.lt.s32.totalorder %s14, 3
      %p223 = pnand %p221, %p222
      %p224 = pneg %p223
      // Predicated region
      $region33: #{tpu_custom_call.1} parent=5 // pred_check
        _
      $region34: #{tpu_custom_call.1} parent=5 // pred_check_branch
        %226 = sbr.rel (%p223) target = $region36
      $region35: #{tpu_custom_call.1} parent=5 // pred_region
        %s227 = ssub.s32 %s14, 1
        // Predicated region
        $region37: #{tpu_custom_call.1} parent=35 // pred_check
          %p228 = pneg %p132
        $region38: #{tpu_custom_call.1} parent=35 // pred_check_branch
          %230 = sbr.rel (%p228) target = $region40
        $region39: #{tpu_custom_call.1} parent=35 // pred_region
          %232 = dma.done [#allocation3], 512
        $region40: #{tpu_custom_call.1} parent=35 // pred_fallthru
          _
        %s233 = smul.u32 4, %s23
        %p234 = scmp.lt.s32.totalorder %s24, 1
        %s235 = scalar_select %p234, %s24, 1
        %p236 = scmp.lt.s32.totalorder %s233, 3
        %s237 = scalar_select %p236, %s233, 3
        %s238 = smul.addr %s235, 4
        %s239 = sadd.s32 %s237, %s238
        %s240 = scalar_lea.vmem %s0, %s239
        %p241 = pneg %p54
        %p242 = pneg %p51
        %p243 = scmp.lt.s32.totalorder %s24, 1
        %s244 = scalar_select %p243, %s24, 1
        %s245 = smul.addr %s244, 8
        %s246 = scalar_lea.vmem %s1, %s245
        %p247 = pneg %p80
        %p248 = pneg %p77
        %p249 = scmp.lt.s32.totalorder %s24, 1
        %s250 = scalar_select %p249, %s24, 1
        %s251 = scalar_lea.vmem %s2, %s250
        %p252 = pneg %p106
        %p253 = pneg %p103
        %p254 = pneg %p132
        %p255 = pneg %p129
        %p256 = pneg %p160
        %p257 = pneg %p157
        %s258 = sand.u32 %s147, 1
        %s259 = scalar_lea.sflag [#allocation4], %s258
        %s260 = sand.u32 %s147, 1
        %s261 = smul.addr %s260, 32
        %s262 = scalar_lea.vmem [#allocation5], %s261
        %s263 = smul.u32 4, %s23
        %p264 = scmp.lt.s32.totalorder %s24, 1
        %s265 = scalar_select %p264, %s24, 1
        %p266 = scmp.lt.s32.totalorder %s263, 3
        %s267 = scalar_select %p266, %s263, 3
        %s268 = smul.addr %s265, 4
        %s269 = sadd.s32 %s267, %s268
        %s270 = scalar_lea.vmem %s0, %s269
        %s271 = smul.u32 4, %s23
        %p272 = scmp.lt.s32.totalorder %s24, 1
        %s273 = scalar_select %p272, %s24, 1
        %s274 = smul.addr %s273, 8
        %s275 = scalar_lea.vmem %s1, %s274
        %p276 = scmp.lt.s32.totalorder %s24, 1
        %s277 = scalar_select %p276, %s24, 1
        %s278 = scalar_lea.vmem %s2, %s277
        %s279 = smul.u32 4, %s23
        %s280 = smul.u32 4, %s23
        %v281 = vld [vmem:[%s275] sm:$0xff]
        %v282 = vld [vmem:[%s278] sm:$0x1]
        %284 = vset.pattern.permute.xlu0 0
        %285 = vperm.xlu0 %284, %v281
        %v286 = vpop.permute.xlu0 %285
        %v289 = vperm.slane %v282, 0
        %v291 = vmul.f32 %v286, %v289
        %v292 = vld [vmem:[%s270] sm:$0x1]
        %v293 = vld [vmem:[%s270 + $0x1] sm:$0x1]
        %v294 = vld [vmem:[%s270 + $0x2] sm:$0x1]
        %v295 = vld [vmem:[%s270 + $0x3] sm:$0x1]
        %v296 = vld [vmem:[#allocation2] sm:$0xff]
        %v297 = vld [vmem:[#allocation2 + $0x8] sm:$0xff]
        %v298 = vld [vmem:[#allocation2 + $0x10] sm:$0xff]
        %v299 = vld [vmem:[#allocation2 + $0x18] sm:$0xff]
        %v300 = vmul.f32 %v291, %v296
        %v301 = vmul.f32 %v291, %v297
        %v302 = vmul.f32 %v291, %v298
        %v303 = vmul.f32 %v291, %v299
        %v308 = vperm.slane %v292, 0
        %v309 = vperm.slane %v293, 0
        %v310 = vperm.slane %v294, 0
        %v311 = vperm.slane %v295, 0
        %312 = vset.pattern.permute.xlu0 0
        %313 = vperm.xlu0 %312, %v308
        %v314 = vpop.permute.xlu0 %313
        %316 = vset.pattern.permute.xlu0 0
        %317 = vperm.xlu0 %316, %v309
        %v318 = vpop.permute.xlu0 %317
        %320 = vset.pattern.permute.xlu0 0
        %321 = vperm.xlu0 %320, %v310
        %v322 = vpop.permute.xlu0 %321
        %324 = vset.pattern.permute.xlu0 0
        %325 = vperm.xlu0 %324, %v311
        %v326 = vpop.permute.xlu0 %325
        %v328 = vmul.f32 %v314, %v300
        %v329 = vmul.f32 %v318, %v301
        %v330 = vmul.f32 %v322, %v302
        %v331 = vmul.f32 %v326, %v303
        %332 = vst [vmem:[%s262] sm:$0xff] %v328
        %333 = vst [vmem:[%s262 + $0x8] sm:$0xff] %v329
        %334 = vst [vmem:[%s262 + $0x10] sm:$0xff] %v330
        %335 = vst [vmem:[%s262 + $0x18] sm:$0xff] %v331
        %s336 = sand.u32 %s147, 1
        %s337 = scalar_lea.sflag [#allocation4], %s336
        %s338 = sand.u32 %s147, 1
        %s339 = smul.addr %s338, 32
        %s340 = scalar_lea.vmem [#allocation5], %s339
        // Predicated region
        $region41: #{tpu_custom_call.1} parent=35 // pred_check
          %p341 = pneg %p157
        $region42: #{tpu_custom_call.1} parent=35 // pred_check_branch
          %343 = sbr.rel (%p341) target = $region44
        $region43: #{tpu_custom_call.1} parent=35 // pred_region
          %s344 = smul.u32 4, %s23
          %346 = vsyncadd %s337, 0
          %s347 = smul.addr %s24, 4
          %s348 = sadd.s32 %s344, %s347
          %s349 = smul.addr %s348, 8
          %s350 = scalar_lea.hbm %s4, %s349
          %s351 = sshll.u32 %s340, 4
          %s352 = int_to_ptr.vmem [resolvable:$true] %s351
          %s353 = sshll.u32 %s350, 4
          %s354 = int_to_ptr.hbm [resolvable:$true] %s353
          %359 = dma.vmem_to_hbm [thread:$0]  %s352, 512, %s354, %s337, 128, 128, 8
        $region44: #{tpu_custom_call.1} parent=35 // pred_fallthru
          _
      $region36: #{tpu_custom_call.1} parent=5 // pred_fallthru
        _
      %p360 = scmp.le.s32.totalorder 2, %s14
      // Predicated region
      $region45: #{tpu_custom_call.1} parent=5 // pred_check
        %p361 = pneg %p360
      $region46: #{tpu_custom_call.1} parent=5 // pred_check_branch
        %363 = sbr.rel (%p361) target = $region48
      $region47: #{tpu_custom_call.1} parent=5 // pred_region
        %s364 = ssub.s32 %s14, 2
        // Predicated region
        $region49: #{tpu_custom_call.1} parent=47 // pred_check
          %p365 = pneg %p163
        $region50: #{tpu_custom_call.1} parent=47 // pred_check_branch
          %367 = sbr.rel (%p365) target = $region52
        $region51: #{tpu_custom_call.1} parent=47 // pred_region
          %s368 = sand.u32 %s148, 1
          %s369 = scalar_lea.sflag [#allocation4], %s368
          %s370 = sand.u32 %s148, 1
          %s371 = smul.addr %s370, 32
          %s372 = scalar_lea.vmem [#allocation5], %s371
          %374 = dma.done %s369, 512
        $region52: #{tpu_custom_call.1} parent=47 // pred_fallthru
          _
      $region48: #{tpu_custom_call.1} parent=5 // pred_fallthru
        _
    $region6: #{tpu_custom_call.1} parent=1 // loop_footer
      %s18 = sadd.s32 1, %s14
    $region7: #{tpu_custom_call.1} parent=1 // loop_footer_branch
      %13 = sbr.rel target = $region3
    $region8: #{tpu_custom_call.1} parent=1 // loop_exit
      _
    %375 = vsyncpa [#allocation3], 1
    %s376 = scalar_lea.sflag [#allocation3], 1
    %377 = vsyncpa %s376, 1
    %378 = vsyncpa [#allocation4], 1
    %s379 = scalar_lea.sflag [#allocation4], 1
    %380 = vsyncpa %s379, 1

// kernel: tpu_custom_call.1
$region0: #{tpu_custom_call.1}
  #allocation0 [shape = 'u32[]', space=smem, size = 0x4, offset = 0x4, fixed_abs, tag = 'smem constant byte address 0x4 - core index']
  #allocation1 [shape = 'u32[72,128]{1,0:T(1,128)}', space=vmem, size = 0x9000, scoped, tag = 'internal scratch']
  %s0 = inlined_call_operand.vmem [shape: f32[2,4,1,1], index: 0, kind: input, shape index: {}]
  %s1 = inlined_call_operand.vmem [shape: f32[2,8,1], index: 1, kind: input, shape index: {}]
  %s2 = inlined_call_operand.vmem [shape: f32[2,1,128], index: 2, kind: input, shape index: {}]
  %s3 = inlined_call_operand.hbm [shape: f32[4,8,128], index: 3, kind: input, shape index: {}]
  %s4 = inlined_call_operand.hbm [shape: f32[2,4,8,128], index: 4, kind: output, shape index: {}]
  %s5 = sld [smem:[#allocation0]]
  $region53: #{tpu_custom_call.1} parent=0
    _
  %s7 = ssub.s32 1, %s5
  %s8 = scalar_select 0, %s7, %s5
  $region1: #{tpu_custom_call.1} parent=0
    #allocation2 [shape = 'u8[16384]{0}', space=vmem, size = 0x4000, scoped, tag = 'input window, operand 3, single buffered']
    #allocation3 [shape = 's32[2]{0}', space=sflag, size = 0x8, scoped, tag = 'scoped memory for tpu_custom_call.1']
    #allocation4 [shape = 's32[2]{0}', space=sflag, size = 0x8, scoped, tag = 'scoped memory for tpu_custom_call.1']
    #allocation5 [shape = 'u8[32768]{0}', space=vmem, size = 0x8000, scoped, tag = 'output window, operand 0']
    %9 = vsyncpa [#allocation3], 0
    %10 = vsyncpa [#allocation4], 0
    %s11 = scalar_lea.sflag [#allocation4], 1
    %12 = vsyncpa %s11, 0
    loop: start=0, step=1, limit=4
    $region2: #{tpu_custom_call.1} parent=1 // loop_pre_header
      _
    $region3: #{tpu_custom_call.1} parent=1 // loop_header
      %s14 = sphi 0, %s18
      %p15 = scmp.ge.s32.totalorder %s14, 4
      %s21 = sphi 0, %s33
      %s22 = sphi 0, %s29
      %s23 = sphi 0, %s21
      %s24 = sphi 0, %s22
      %s25 = sphi 0, %s23
      %s26 = sphi 0, %s24
      %s38 = sphi 0, %s40
      %s41 = sphi 0, %s38
      %s42 = sphi 0, %s41
      %s58 = sphi 0, %s42
      %s64 = sphi 0, %s66
      %s67 = sphi 0, %s64
      %s68 = sphi 0, %s67
      %s84 = sphi 0, %s68
      %s90 = sphi 0, %s92
      %s93 = sphi 0, %s90
      %s94 = sphi 0, %s93
      %s110 = sphi 0, %s94
      %s116 = sphi 0, %s118
      %s119 = sphi 0, %s116
      %s120 = sphi 0, %s119
      %s136 = sphi 0, %s120
      %s144 = sphi 0, %s146
      %s147 = sphi 0, %s144
      %s148 = sphi 0, %s147
      %s164 = sphi 0, %s148
    $region4: #{tpu_custom_call.1} parent=1 // loop_header_branch
      %17 = sbr.rel (%p15) target = $region8
    $region5: #{tpu_custom_call.1} parent=1 // loop_body
      %s19 = ssub.s32 %s14, 1
      %s20 = ssub.s32 %s14, 2
      %s27 = sadd.s32 1, %s22
      %p28 = scmp.ge.s32.totalorder %s27, 2
      %s29 = scalar_select %p28, 0, %s27
      %s30 = sadd.s32 1, %s21
      %s31 = scalar_select %p28, %s30, %s21
      %p32 = scmp.ge.s32.totalorder %s31, 1
      %s33 = scalar_select %p32, 0, %s31
      %s34 = ssub.s32 %s22, %s29
      %s35 = ssub.s32 %s21, %s33
      %s36 = sor.u32 %s34, %s35
      %p37 = scmp.eq.s32.totalorder %s36, 0
      %s39 = sadd.s32 %s38, 1
      %s40 = scalar_select %p37, %s38, %s39
      %p43 = pneg %p37
      %p44 = scmp.eq.s32.totalorder %s14, 1
      %p45 = por %p43, %p44
      %p46 = scmp.ne.s32.totalorder %s38, %s41
      %p47 = scmp.eq.s32.totalorder %s14, 0
      %p48 = por %p46, %p47
      %p49 = scmp.ne.s32.totalorder %s38, %s41
      %p50 = scmp.eq.s32.totalorder %s19, 1
      %p51 = por %p49, %p50
      %p52 = scmp.ne.s32.totalorder %s41, %s42
      %p53 = scmp.eq.s32.totalorder %s19, 0
      %p54 = por %p52, %p53
      %p55 = scmp.ne.s32.totalorder %s41, %s42
      %p56 = scmp.eq.s32.totalorder %s20, 1
      %p57 = por %p55, %p56
      %p59 = scmp.ne.s32.totalorder %s42, %s58
      %p60 = scmp.eq.s32.totalorder %s20, 0
      %p61 = por %p59, %p60
      %s62 = ssub.s32 %s22, %s29
      %p63 = scmp.eq.s32.totalorder %s62, 0
      %s65 = sadd.s32 %s64, 1
      %s66 = scalar_select %p63, %s64, %s65
      %p69 = pneg %p63
      %p70 = scmp.eq.s32.totalorder %s14, 1
      %p71 = por %p69, %p70
      %p72 = scmp.ne.s32.totalorder %s64, %s67
      %p73 = scmp.eq.s32.totalorder %s14, 0
      %p74 = por %p72, %p73
      %p75 = scmp.ne.s32.totalorder %s64, %s67
      %p76 = scmp.eq.s32.totalorder %s19, 1
      %p77 = por %p75, %p76
      %p78 = scmp.ne.s32.totalorder %s67, %s68
      %p79 = scmp.eq.s32.totalorder %s19, 0
      %p80 = por %p78, %p79
      %p81 = scmp.ne.s32.totalorder %s67, %s68
      %p82 = scmp.eq.s32.totalorder %s20, 1
      %p83 = por %p81, %p82
      %p85 = scmp.ne.s32.totalorder %s68, %s84
      %p86 = scmp.eq.s32.totalorder %s20, 0
      %p87 = por %p85, %p86
      %s88 = ssub.s32 %s22, %s29
      %p89 = scmp.eq.s32.totalorder %s88, 0
      %s91 = sadd.s32 %s90, 1
      %s92 = scalar_select %p89, %s90, %s91
      %p95 = pneg %p89
      %p96 = scmp.eq.s32.totalorder %s14, 1
      %p97 = por %p95, %p96
      %p98 = scmp.ne.s32.totalorder %s90, %s93
      %p99 = scmp.eq.s32.totalorder %s14, 0
      %p100 = por %p98, %p99
      %p101 = scmp.ne.s32.totalorder %s90, %s93
      %p102 = scmp.eq.s32.totalorder %s19, 1
      %p103 = por %p101, %p102
      %p104 = scmp.ne.s32.totalorder %s93, %s94
      %p105 = scmp.eq.s32.totalorder %s19, 0
      %p106 = por %p104, %p105
      %p107 = scmp.ne.s32.totalorder %s93, %s94
      %p108 = scmp.eq.s32.totalorder %s20, 1
      %p109 = por %p107, %p108
      %p111 = scmp.ne.s32.totalorder %s94, %s110
      %p112 = scmp.eq.s32.totalorder %s20, 0
      %p113 = por %p111, %p112
      %s114 = ssub.s32 %s21, %s33
      %p115 = scmp.eq.s32.totalorder %s114, 0
      %s117 = sadd.s32 %s116, 1
      %s118 = scalar_select %p115, %s116, %s117
      %p121 = pneg %p115
      %p122 = scmp.eq.s32.totalorder %s14, 1
      %p123 = por %p121, %p122
      %p124 = scmp.ne.s32.totalorder %s116, %s119
      %p125 = scmp.eq.s32.totalorder %s14, 0
      %p126 = por %p124, %p125
      %p127 = scmp.ne.s32.totalorder %s116, %s119
      %p128 = scmp.eq.s32.totalorder %s19, 1
      %p129 = por %p127, %p128
      %p130 = scmp.ne.s32.totalorder %s119, %s120
      %p131 = scmp.eq.s32.totalorder %s19, 0
      %p132 = por %p130, %p131
      %p133 = scmp.ne.s32.totalorder %s119, %s120
      %p134 = scmp.eq.s32.totalorder %s20, 1
      %p135 = por %p133, %p134
      %p137 = scmp.ne.s32.totalorder %s120, %s136
      %p138 = scmp.eq.s32.totalorder %s20, 0
      %p139 = por %p137, %p138
      %s140 = ssub.s32 %s22, %s29
      %s141 = ssub.s32 %s21, %s33
      %s142 = sor.u32 %s140, %s141
      %p143 = scmp.eq.s32.totalorder %s142, 0
      %s145 = sadd.s32 %s144, 1
      %s146 = scalar_select %p143, %s144, %s145
      %p149 = pneg %p143
      %p150 = scmp.eq.s32.totalorder %s14, 1
      %p151 = por %p149, %p150
      %p152 = scmp.ne.s32.totalorder %s144, %s147
      %p153 = scmp.eq.s32.totalorder %s14, 0
      %p154 = por %p152, %p153
      %p155 = scmp.ne.s32.totalorder %s144, %s147
      %p156 = scmp.eq.s32.totalorder %s19, 1
      %p157 = por %p155, %p156
      %p158 = scmp.ne.s32.totalorder %s147, %s148
      %p159 = scmp.eq.s32.totalorder %s19, 0
      %p160 = por %p158, %p159
      %p161 = scmp.ne.s32.totalorder %s147, %s148
      %p162 = scmp.eq.s32.totalorder %s20, 1
      %p163 = por %p161, %p162
      %p165 = scmp.ne.s32.totalorder %s148, %s164
      %p166 = scmp.eq.s32.totalorder %s20, 0
      %p167 = por %p165, %p166
      %p168 = scmp.le.s32.totalorder 1, %s14
      %p169 = scmp.lt.s32.totalorder %s14, 3
      %p170 = pnand %p168, %p169
      %p171 = pneg %p170
      // Predicated region
      $region9: #{tpu_custom_call.1} parent=5 // pred_check
        _
      $region10: #{tpu_custom_call.1} parent=5 // pred_check_branch
        %173 = sbr.rel (%p170) target = $region12
      $region11: #{tpu_custom_call.1} parent=5 // pred_region
        %s174 = ssub.s32 %s14, 1
        // Predicated region
        $region13: #{tpu_custom_call.1} parent=11 // pred_check
          %p175 = pneg %p132
        $region14: #{tpu_custom_call.1} parent=11 // pred_check_branch
          %177 = sbr.rel (%p175) target = $region16
        $region15: #{tpu_custom_call.1} parent=11 // pred_region
          %s178 = smul.u32 4, %s23
          %180 = vsyncadd [#allocation3], 0
          %s181 = smul.addr %s178, 8
          %s182 = scalar_lea.hbm %s3, %s181
          %s183 = sshll.u32 %s182, 4
          %s184 = int_to_ptr.hbm [resolvable:$true] %s183
          %s185 = sshll.u32 [#allocation2], 4
          %s186 = int_to_ptr.vmem [resolvable:$true] %s185
          %191 = dma.hbm_to_vmem [thread:$0]  %s184, 512, %s186, [#allocation3], 128, 128, 8
        $region16: #{tpu_custom_call.1} parent=11 // pred_fallthru
          _
      $region12: #{tpu_custom_call.1} parent=5 // pred_fallthru
        _
      %p192 = scmp.lt.s32.totalorder %s14, 2
      // Predicated region
      $region17: #{tpu_custom_call.1} parent=5 // pred_check
        %p193 = pneg %p192
      $region18: #{tpu_custom_call.1} parent=5 // pred_check_branch
        %195 = sbr.rel (%p193) target = $region20
      $region19: #{tpu_custom_call.1} parent=5 // pred_region
        // Predicated region
        $region21: #{tpu_custom_call.1} parent=19 // pred_check
          %p196 = pneg %p48
        $region22: #{tpu_custom_call.1} parent=19 // pred_check_branch
          %198 = sbr.rel (%p196) target = $region24
        $region23: #{tpu_custom_call.1} parent=19 // pred_region
          %s199 = smul.u32 4, %s21
          %p200 = scmp.lt.s32.totalorder %s22, 1
          %s201 = scalar_select %p200, %s22, 1
          %p202 = scmp.lt.s32.totalorder %s199, 3
          %s203 = scalar_select %p202, %s199, 3
          %s204 = smul.addr %s201, 4
          %s205 = sadd.s32 %s203, %s204
          %s206 = scalar_lea.vmem %s0, %s205
          %s207 = smul.u32 4, %s21
        $region24: #{tpu_custom_call.1} parent=19 // pred_fallthru
          _
        // Predicated region
        $region25: #{tpu_custom_call.1} parent=19 // pred_check
          %p208 = pneg %p74
        $region26: #{tpu_custom_call.1} parent=19 // pred_check_branch
          %210 = sbr.rel (%p208) target = $region28
        $region27: #{tpu_custom_call.1} parent=19 // pred_region
          %p211 = scmp.lt.s32.totalorder %s22, 1
          %s212 = scalar_select %p211, %s22, 1
          %s213 = smul.addr %s212, 8
          %s214 = scalar_lea.vmem %s1, %s213
        $region28: #{tpu_custom_call.1} parent=19 // pred_fallthru
          _
        // Predicated region
        $region29: #{tpu_custom_call.1} parent=19 // pred_check
          %p215 = pneg %p100
        $region30: #{tpu_custom_call.1} parent=19 // pred_check_branch
          %217 = sbr.rel (%p215) target = $region32
        $region31: #{tpu_custom_call.1} parent=19 // pred_region
          %p218 = scmp.lt.s32.totalorder %s22, 1
          %s219 = scalar_select %p218, %s22, 1
          %s220 = scalar_lea.vmem %s2, %s219
        $region32: #{tpu_custom_call.1} parent=19 // pred_fallthru
          _
      $region20: #{tpu_custom_call.1} parent=5 // pred_fallthru
        _
      %p221 = scmp.le.s32.totalorder 1, %s14
      %p222 = scmp.lt.s32.totalorder %s14, 3
      %p223 = pnand %p221, %p222
      %p224 = pneg %p223
      // Predicated region
      $region33: #{tpu_custom_call.1} parent=5 // pred_check
        _
      $region34: #{tpu_custom_call.1} parent=5 // pred_check_branch
        %226 = sbr.rel (%p223) target = $region36
      $region35: #{tpu_custom_call.1} parent=5 // pred_region
        %s227 = ssub.s32 %s14, 1
        // Predicated region
        $region37: #{tpu_custom_call.1} parent=35 // pred_check
          %p228 = pneg %p132
        $region38: #{tpu_custom_call.1} parent=35 // pred_check_branch
          %230 = sbr.rel (%p228) target = $region40
        $region39: #{tpu_custom_call.1} parent=35 // pred_region
          %232 = dma.done [#allocation3], 512
        $region40: #{tpu_custom_call.1} parent=35 // pred_fallthru
          _
        %s233 = smul.u32 4, %s23
        %p234 = scmp.lt.s32.totalorder %s24, 1
        %s235 = scalar_select %p234, %s24, 1
        %p236 = scmp.lt.s32.totalorder %s233, 3
        %s237 = scalar_select %p236, %s233, 3
        %s238 = smul.addr %s235, 4
        %s239 = sadd.s32 %s237, %s238
        %s240 = scalar_lea.vmem %s0, %s239
        %p241 = pneg %p54
        %p242 = pneg %p51
        %p243 = scmp.lt.s32.totalorder %s24, 1
        %s244 = scalar_select %p243, %s24, 1
        %s245 = smul.addr %s244, 8
        %s246 = scalar_lea.vmem %s1, %s245
        %p247 = pneg %p80
        %p248 = pneg %p77
        %p249 = scmp.lt.s32.totalorder %s24, 1
        %s250 = scalar_select %p249, %s24, 1
        %s251 = scalar_lea.vmem %s2, %s250
        %p252 = pneg %p106
        %p253 = pneg %p103
        %p254 = pneg %p132
        %p255 = pneg %p129
        %p256 = pneg %p160
        %p257 = pneg %p157
        %s258 = sand.u32 %s147, 1
        %s259 = scalar_lea.sflag [#allocation4], %s258
        %s260 = sand.u32 %s147, 1
        %s261 = smul.addr %s260, 32
        %s262 = scalar_lea.vmem [#allocation5], %s261
        %s263 = smul.u32 4, %s23
        %p264 = scmp.lt.s32.totalorder %s24, 1
        %s265 = scalar_select %p264, %s24, 1
        %p266 = scmp.lt.s32.totalorder %s263, 3
        %s267 = scalar_select %p266, %s263, 3
        %s268 = smul.addr %s265, 4
        %s269 = sadd.s32 %s267, %s268
        %s270 = scalar_lea.vmem %s0, %s269
        %s271 = smul.u32 4, %s23
        %p272 = scmp.lt.s32.totalorder %s24, 1
        %s273 = scalar_select %p272, %s24, 1
        %s274 = smul.addr %s273, 8
        %s275 = scalar_lea.vmem %s1, %s274
        %p276 = scmp.lt.s32.totalorder %s24, 1
        %s277 = scalar_select %p276, %s24, 1
        %s278 = scalar_lea.vmem %s2, %s277
        %s279 = smul.u32 4, %s23
        %s280 = smul.u32 4, %s23
        %v281 = vld [vmem:[%s275] sm:$0xff]
        %v282 = vld [vmem:[%s278] sm:$0x1]
        %284 = vset.pattern.permute.xlu0 0
        %285 = vperm.xlu0 %284, %v281
        %v286 = vpop.permute.xlu0 %285
        %v289 = vperm.slane %v282, 0
        %v291 = vmul.f32 %v286, %v289
        %v292 = vld [vmem:[%s270] sm:$0x1]
        %v293 = vld [vmem:[%s270 + $0x1] sm:$0x1]
        %v294 = vld [vmem:[%s270 + $0x2] sm:$0x1]
        %v295 = vld [vmem:[%s270 + $0x3] sm:$0x1]
        %v296 = vld [vmem:[#allocation2] sm:$0xff]
        %v297 = vld [vmem:[#allocation2 + $0x8] sm:$0xff]
        %v298 = vld [vmem:[#allocation2 + $0x10] sm:$0xff]
        %v299 = vld [vmem:[#allocation2 + $0x18] sm:$0xff]
        %v300 = vmul.f32 %v291, %v296
        %v301 = vmul.f32 %v291, %v297
        %v302 = vmul.f32 %v291, %v298
        %v303 = vmul.f32 %v291, %v299
        %v308 = vperm.slane %v292, 0
        %v309 = vperm.slane %v293, 0
        %v310 = vperm.slane %v294, 0
        %v311 = vperm.slane %v295, 0
        %312 = vset.pattern.permute.xlu0 0
        %313 = vperm.xlu0 %312, %v308
        %v314 = vpop.permute.xlu0 %313
        %316 = vset.pattern.permute.xlu0 0
        %317 = vperm.xlu0 %316, %v309
        %v318 = vpop.permute.xlu0 %317
        %320 = vset.pattern.permute.xlu0 0
        %321 = vperm.xlu0 %320, %v310
        %v322 = vpop.permute.xlu0 %321
        %324 = vset.pattern.permute.xlu0 0
        %325 = vperm.xlu0 %324, %v311
        %v326 = vpop.permute.xlu0 %325
        %v328 = vmul.f32 %v314, %v300
        %v329 = vmul.f32 %v318, %v301
        %v330 = vmul.f32 %v322, %v302
        %v331 = vmul.f32 %v326, %v303
        %332 = vst [vmem:[%s262] sm:$0xff] %v328
        %333 = vst [vmem:[%s262 + $0x8] sm:$0xff] %v329
        %334 = vst [vmem:[%s262 + $0x10] sm:$0xff] %v330
        %335 = vst [vmem:[%s262 + $0x18] sm:$0xff] %v331
        %s336 = sand.u32 %s147, 1
        %s337 = scalar_lea.sflag [#allocation4], %s336
        %s338 = sand.u32 %s147, 1
        %s339 = smul.addr %s338, 32
        %s340 = scalar_lea.vmem [#allocation5], %s339
        // Predicated region
        $region41: #{tpu_custom_call.1} parent=35 // pred_check
          %p341 = pneg %p157
        $region42: #{tpu_custom_call.1} parent=35 // pred_check_branch
          %343 = sbr.rel (%p341) target = $region44
        $region43: #{tpu_custom_call.1} parent=35 // pred_region
          %s344 = smul.u32 4, %s23
          %346 = vsyncadd %s337, 0
          %s347 = smul.addr %s24, 4
          %s348 = sadd.s32 %s344, %s347
          %s349 = smul.addr %s348, 8
          %s350 = scalar_lea.hbm %s4, %s349
          %s351 = sshll.u32 %s340, 4
          %s352 = int_to_ptr.vmem [resolvable:$true] %s351
          %s353 = sshll.u32 %s350, 4
          %s354 = int_to_ptr.hbm [resolvable:$true] %s353
          %359 = dma.vmem_to_hbm [thread:$0]  %s352, 512, %s354, %s337, 128, 128, 8
        $region44: #{tpu_custom_call.1} parent=35 // pred_fallthru
          _
      $region36: #{tpu_custom_call.1} parent=5 // pred_fallthru
        _
      %p360 = scmp.le.s32.totalorder 2, %s14
      // Predicated region
      $region45: #{tpu_custom_call.1} parent=5 // pred_check
        %p361 = pneg %p360
      $region46: #{tpu_custom_call.1} parent=5 // pred_check_branch
        %363 = sbr.rel (%p361) target = $region48
      $region47: #{tpu_custom_call.1} parent=5 // pred_region
        %s364 = ssub.s32 %s14, 2
        // Predicated region
        $region49: #{tpu_custom_call.1} parent=47 // pred_check
          %p365 = pneg %p163
        $region50: #{tpu_custom_call.1} parent=47 // pred_check_branch
          %367 = sbr.rel (%p365) target = $region52
        $region51: #{tpu_custom_call.1} parent=47 // pred_region
          %s368 = sand.u32 %s148, 1
          %s369 = scalar_lea.sflag [#allocation4], %s368
          %s370 = sand.u32 %s148, 1
          %s371 = smul.addr %s370, 32
          %s372 = scalar_lea.vmem [#allocation5], %s371
          %374 = dma.done %s369, 512
        $region52: #{tpu_custom_call.1} parent=47 // pred_fallthru
          _
      $region48: #{tpu_custom_call.1} parent=5 // pred_fallthru
        _
    $region6: #{tpu_custom_call.1} parent=1 // loop_footer
      %s18 = sadd.s32 1, %s14
    $region7: #{tpu_custom_call.1} parent=1 // loop_footer_branch
      %13 = sbr.rel target = $region3
    $region8: #{tpu_custom_call.1} parent=1 // loop_exit
      _
    %375 = vsyncpa [#allocation3], 1
    %s376 = scalar_lea.sflag [#allocation3], 1
    %377 = vsyncpa %s376, 1
    %378 = vsyncpa [#allocation4], 1
    %s379 = scalar_lea.sflag [#allocation4], 1
    %380 = vsyncpa %s379, 1

</llo_original>
